<compile_context>
chip_gen: v6e
topology: v6e:2x2x1
jax: 0.10.0
libtpu: 0.0.40
codegen_flags: <defaults>
</compile_context>

<pallas_src>
import math

import jax
import jax.numpy as jnp
from jax.experimental import pallas as pl
from jax.experimental.pallas import tpu as pltpu

# Per-tile VMEM budget (bytes).  2 specs x 2 pipeline buffers -> 16 MiB total.
_TILE_BYTES = 4 * 1024 * 1024
# Explicit scoped-VMEM limit: above v5e's 16 MiB default, below v7x's 64 MiB
# physical VMEM, equal to the v6e/v7x default.
_VMEM_LIMIT_BYTES = 32 * 1024 * 1024
# Max bytes for one row of a tile (lane width): 8 KiB = 2048 f32 / 4096 bf16.
_LANE_BYTES = 8 * 1024


def _copy_kernel(x_ref, o_ref):
    # Pure lane-dense VMEM copy; no per-element VPU work.
    o_ref[...] = x_ref[...]


def _sublane_align(itemsize: int) -> int:
    # f32 -> 8, bf16 -> 16, int8 -> 32: keeps packed sublanes dense.
    return max(8, 32 // itemsize)


def _round_down(x: int, m: int) -> int:
    return (x // m) * m


def _dense_view(total: int, itemsize: int):
    """Pick a sublane/lane-dense 2D view (rows, lanes) of a contiguous buffer.

    `lanes` is a multiple of 128 that divides `total`; rows = total // lanes.
    Prefer row counts that are a multiple of the dtype's sublane alignment
    (full vregs, unmasked vst), then the widest lanes up to _LANE_BYTES.
    Returns None if no multiple-of-128 lane width divides `total`.
    """
    lane_cap = max(128, _round_down(_LANE_BYTES // itemsize, 128))
    align = _sublane_align(itemsize)
    best = None       # widest lanes with sublane-aligned row count
    best_any = None   # widest lanes regardless of row alignment
    lanes = 128
    while lanes <= min(total, lane_cap):
        if total % lanes == 0:
            rows = total // lanes
            best_any = (rows, lanes)
            if rows % align == 0:
                best = (rows, lanes)
        lanes += 128
    return best if best is not None else best_any


def _blocks(rows: int, lanes: int, itemsize: int):
    """Byte-based, dtype-aware tile sizes obeying the (8, 128) rule."""
    align = _sublane_align(itemsize)
    lane_cap = max(128, _round_down(_LANE_BYTES // itemsize, 128))
    # Lane block: full dim if it fits the lane byte cap, else a 128-multiple.
    block_l = lanes if lanes <= lane_cap else lane_cap
    # Row block: fixed bytes per tile so step count is dtype-independent.
    rows_per_tile = max(1, _TILE_BYTES // (block_l * itemsize))
    block_r = _round_down(rows_per_tile, align)
    if block_r == 0:
        block_r = align
    if block_r >= rows:
        block_r = rows  # full dimension is always legal
    return block_r, block_l


def flatten(x: jax.Array) -> jax.Array:
    """Pallas equivalent of torch `input.view(input.size(0), -1)`."""
    n = x.shape[0]
    flat = int(math.prod(x.shape[1:])) if x.ndim > 1 else 1
    total = n * flat
    itemsize = jnp.dtype(x.dtype).itemsize

    # Sublane/lane-dense view of the contiguous buffer, independent of
    # (n, flat).  Fallback to the plain (n, flat) view for ragged totals.
    dense = _dense_view(total, itemsize) if total >= 128 else None
    rows, lanes = dense if dense is not None else (n, flat)

    # Metadata-only reshape (row-major, matches torch .view on contiguous).
    x2 = x.reshape(rows, lanes)

    block_r, block_l = _blocks(rows, lanes, itemsize)
    grid = (pl.cdiv(rows, block_r), pl.cdiv(lanes, block_l))

    out = pl.pallas_call(
        _copy_kernel,
        out_shape=jax.ShapeDtypeStruct((rows, lanes), x.dtype),
        grid=grid,
        in_specs=[pl.BlockSpec((block_r, block_l), lambda i, j: (i, j))],
        out_specs=pl.BlockSpec((block_r, block_l), lambda i, j: (i, j)),
        compiler_params=pltpu.CompilerParams(
            # Every output block is written exactly once -> both axes parallel
            # (lets v7x's two TensorCores shard even a one-row-block grid).
            dimension_semantics=("parallel", "parallel"),
            vmem_limit_bytes=_VMEM_LIMIT_BYTES,
        ),
    )(x2)

    # Metadata-only reshape back to torch's (n, C*H*W) output shape.
    return out.reshape(n, flat)


if __name__ == "__main__":
    key = jax.random.PRNGKey(0)
    # Small NCHW input consistent with how Flatten is used after convs.
    x = jax.random.normal(key, (2, 4, 16, 16), dtype=jnp.float32)

    out = flatten(x)
    out = jax.block_until_ready(out)

    # Correctness check against plain JAX reshape (== torch .view semantics).
    ref = x.reshape(x.shape[0], -1)
    assert out.shape == (2, 4 * 16 * 16), out.shape
    assert out.dtype == x.dtype
    assert jnp.array_equal(out, ref), "flatten kernel mismatch"

    print("KERNEL_OK")
</pallas_src>

<mosaic_0001>
module attributes {stable_mosaic.version = 11 : i64} {
  func.func @_copy_kernel(%arg0: i32, %arg1: i32, %arg2: memref<8x256xf32, #tpu.memory_space<vmem>>, %arg3: memref<8x256xf32, #tpu.memory_space<vmem>>) attributes {dimension_semantics = [#tpu.dimension_semantics<parallel>, #tpu.dimension_semantics<parallel>], iteration_bounds = array<i64: 1, 1>, scalar_prefetch = 0 : i64, scratch_operands = 0 : i64, tpu.core_type = #tpu.core_type<tc>, window_params = [{transform_indices = @transform_0, window_bounds = array<i64: 8, 256>}, {transform_indices = @transform_1, window_bounds = array<i64: 8, 256>}]} {
    %c0 = arith.constant 0 : index
    %c0_0 = arith.constant 0 : index
    %0 = vector.load %arg2[%c0, %c0_0] : memref<8x256xf32, #tpu.memory_space<vmem>>, vector<8x256xf32>
    %c0_1 = arith.constant 0 : index
    %c0_2 = arith.constant 0 : index
    %1 = vector.load %arg3[%c0_1, %c0_2] : memref<8x256xf32, #tpu.memory_space<vmem>>, vector<8x256xf32>
    tpu.vector_store %arg3[%c0_1, %c0_2], %0 {strides = array<i32>} : memref<8x256xf32, #tpu.memory_space<vmem>>, vector<8x256xf32>,
    return
  }
  func.func @transform_0(%arg0: i32, %arg1: i32) -> (i32, i32) {
    %c0_i32 = arith.constant 0 : i32
    return %arg0, %arg1 : i32, i32
  }
  func.func @transform_1(%arg0: i32, %arg1: i32) -> (i32, i32) {
    %c0_i32 = arith.constant 0 : i32
    return %arg0, %arg1 : i32, i32
  }
}

</mosaic_0001>

<llo_original>
// kernel: tpu_custom_call.1
$region0: #{tpu_custom_call.1}
  #allocation0 [shape = 'u32[]', space=smem, size = 0x4, offset = 0x4, fixed_abs, tag = 'smem constant byte address 0x4 - core index']
  #allocation1 [shape = 'u32[144,128]{1,0:T(1,128)}', space=vmem, size = 0x12000, scoped, tag = 'internal scratch']
  %s0 = inlined_call_operand.hbm [shape: f32[8,256], index: 0, kind: input, shape index: {}]
  %s1 = inlined_call_operand.hbm [shape: f32[8,256], index: 1, kind: output, shape index: {}]
  %s2 = sld [smem:[#allocation0]]
  $region18: #{tpu_custom_call.1} parent=0
    _
  %s4 = ssub.s32 1, %s2
  %s5 = scalar_select 0, %s4, %s2
  $region1: #{tpu_custom_call.1} parent=0
    #allocation2 [shape = 'u8[8192]{0}', space=vmem, size = 0x2000, scoped, tag = 'input window, operand 0, single buffered']
    #allocation3 [shape = 's32[1]{0}', space=sflag, size = 0x4, scoped, tag = 'scoped memory for tpu_custom_call.1']
    #allocation4 [shape = 's32[1]{0}', space=sflag, size = 0x4, scoped, tag = 'scoped memory for tpu_custom_call.1']
    #allocation5 [shape = 'u8[8192]{0}', space=vmem, size = 0x2000, scoped, tag = 'output window, operand 0, single buffered']
    %6 = vsyncpa [#allocation3], 0
    %7 = vsyncpa [#allocation4], 0
    // Predicated region
    $region2: #{tpu_custom_call.1} parent=1 // pred_check
      _
    $region3: #{tpu_custom_call.1} parent=1 // pred_check_branch
      %9 = sbr.rel (0) target = $region5
    $region4: #{tpu_custom_call.1} parent=1 // pred_region
      %s11 = ssub.s32 256, 256
      %12 = vsyncadd [#allocation3], %s11
      %s14 = sshll.u32 [#allocation2], 4
      %s15 = int_to_ptr.vmem [resolvable:$true] %s14
      %17 = dma.hbm_to_vmem [thread:$0]  %s0, 256, %s15, [#allocation3]
    $region5: #{tpu_custom_call.1} parent=1 // pred_fallthru
      _
    // Predicated region
    $region6: #{tpu_custom_call.1} parent=1 // pred_check
      _
    $region7: #{tpu_custom_call.1} parent=1 // pred_check_branch
      %19 = sbr.rel (0) target = $region9
    $region8: #{tpu_custom_call.1} parent=1 // pred_region
      %20 = dma.done [#allocation3], 256
    $region9: #{tpu_custom_call.1} parent=1 // pred_fallthru
      _
    %v21 = vld [vmem:[#allocation2] sm:$0xff]
    %v22 = vld [vmem:[#allocation2 + $0x8] sm:$0xff]
    %23 = vst [vmem:[#allocation5] sm:$0xff] %v21
    %24 = vst [vmem:[#allocation5 + $0x8] sm:$0xff] %v22
    // Predicated region
    $region10: #{tpu_custom_call.1} parent=1 // pred_check
      _
    $region11: #{tpu_custom_call.1} parent=1 // pred_check_branch
      %26 = sbr.rel (0) target = $region13
    $region12: #{tpu_custom_call.1} parent=1 // pred_region
      %s28 = ssub.s32 256, 256
      %29 = vsyncadd [#allocation4], %s28
      %s31 = sshll.u32 [#allocation5], 4
      %s32 = int_to_ptr.vmem [resolvable:$true] %s31
      %34 = dma.vmem_to_hbm [thread:$0]  %s32, 256, %s1, [#allocation4]
    $region13: #{tpu_custom_call.1} parent=1 // pred_fallthru
      _
    // Predicated region
    $region14: #{tpu_custom_call.1} parent=1 // pred_check
      _
    $region15: #{tpu_custom_call.1} parent=1 // pred_check_branch
      %36 = sbr.rel (0) target = $region17
    $region16: #{tpu_custom_call.1} parent=1 // pred_region
      %37 = dma.done [#allocation4], 256
    $region17: #{tpu_custom_call.1} parent=1 // pred_fallthru
      _
    %38 = vsyncpa [#allocation3], 1
    %39 = vsyncpa [#allocation4], 1

</llo_original>
